<compile_context>
chip_gen: v5e
topology: v5e:2x2
jax: 0.10.0
libtpu: 0.0.40
codegen_flags: <defaults>
</compile_context>

<pallas_src>
import jax
import jax.numpy as jnp
from jax.experimental import pallas as pl
from jax.experimental.pallas import tpu as pltpu


def _add_kernel(a_ref, b_ref, o_ref):
    # Whole-array VMEM refs; one vectorized elementwise add.
    o_ref[...] = a_ref[...] + b_ref[...]


def pallas_add(x148, x150):
    assert x148.shape == x150.shape and x148.dtype == x150.dtype
    orig_shape = x148.shape
    total = 1
    for d in orig_shape:
        total *= d

    # Lane-dense 2D slab: keep the last dim = 128 (multiple of the lane width) so
    # stores are full-width vst. Fallback keeps sublane dim >= 8 to avoid 8x padding.
    if total % 128 == 0:
        slab_shape = (total // 128, 128)
    elif total % 8 == 0:
        slab_shape = (8, total // 8)
    else:
        slab_shape = (1, total)

    a2 = x148.reshape(slab_shape)
    b2 = x150.reshape(slab_shape)

    out2 = pl.pallas_call(
        _add_kernel,
        out_shape=jax.ShapeDtypeStruct(a2.shape, a2.dtype),
        in_specs=[
            pl.BlockSpec(memory_space=pltpu.MemorySpace.VMEM),
            pl.BlockSpec(memory_space=pltpu.MemorySpace.VMEM),
        ],
        out_specs=pl.BlockSpec(memory_space=pltpu.MemorySpace.VMEM),
    )(a2, b2)

    return out2.reshape(orig_shape)


if __name__ == "__main__":
    key = jax.random.PRNGKey(0)
    k1, k2 = jax.random.split(key)
    # Shapes from the module's forward: [1, 2048, 7, 7] (already small: ~392 KiB each).
    x148 = jax.random.normal(k1, (1, 2048, 7, 7), dtype=jnp.float32)
    x150 = jax.random.normal(k2, (1, 2048, 7, 7), dtype=jnp.float32)

    out = pallas_add(x148, x150)
    jax.block_until_ready(out)

    ref = x148 + x150
    assert out.shape == (1, 2048, 7, 7)
    assert jnp.allclose(out, ref, atol=1e-6, rtol=1e-6)
    print("KERNEL_OK")
</pallas_src>

<mosaic_0001>
module attributes {stable_mosaic.version = 11 : i64} {
  func.func @_add_kernel(%arg0: memref<784x128xf32, #tpu.memory_space<vmem>>, %arg1: memref<784x128xf32, #tpu.memory_space<vmem>>, %arg2: memref<784x128xf32, #tpu.memory_space<vmem>>) attributes {dimension_semantics = [], scalar_prefetch = 0 : i64, scratch_operands = 0 : i64, tpu.core_type = #tpu.core_type<tc>} {
    %c0 = arith.constant 0 : index
    %c0_0 = arith.constant 0 : index
    %0 = vector.load %arg0[%c0, %c0_0] : memref<784x128xf32, #tpu.memory_space<vmem>>, vector<784x128xf32>
    %c0_1 = arith.constant 0 : index
    %c0_2 = arith.constant 0 : index
    %1 = vector.load %arg1[%c0_1, %c0_2] : memref<784x128xf32, #tpu.memory_space<vmem>>, vector<784x128xf32>
    %2 = arith.addf %0, %1 : vector<784x128xf32>
    %c0_3 = arith.constant 0 : index
    %c0_4 = arith.constant 0 : index
    %3 = vector.load %arg2[%c0_3, %c0_4] : memref<784x128xf32, #tpu.memory_space<vmem>>, vector<784x128xf32>
    tpu.vector_store %arg2[%c0_3, %c0_4], %2 {strides = array<i32>} : memref<784x128xf32, #tpu.memory_space<vmem>>, vector<784x128xf32>,
    return
  }
}

</mosaic_0001>

<llo_original>
// kernel: tpu_custom_call.1
$region0: #{tpu_custom_call.1}
  #allocation0 [shape = 'u32[]', space=smem, size = 0x4, offset = 0x4, fixed_abs, tag = 'smem constant byte address 0x4 - core index']
  #allocation1 [shape = 'u32[72,128]{1,0:T(1,128)}', space=vmem, size = 0x9000, scoped, tag = 'internal scratch']
  %s0 = inlined_call_operand.hbm [shape: f32[784,128], index: 0, kind: input, shape index: {}]
  %s1 = inlined_call_operand.hbm [shape: f32[784,128], index: 1, kind: input, shape index: {}]
  %s2 = inlined_call_operand.hbm [shape: f32[784,128], index: 2, kind: output, shape index: {}]
  %s3 = sld [smem:[#allocation0]]
  $region26: #{tpu_custom_call.1} parent=0
    _
  %s5 = ssub.s32 1, %s3
  %s6 = scalar_select 0, %s5, %s3
  $region1: #{tpu_custom_call.1} parent=0
    #allocation2 [shape = 'u8[401408]{0}', space=vmem, size = 0x62000, scoped, tag = 'input window, operand 0, single buffered']
    #allocation3 [shape = 's32[1]{0}', space=sflag, size = 0x4, scoped, tag = 'scoped memory for tpu_custom_call.1']
    #allocation4 [shape = 's32[1]{0}', space=sflag, size = 0x4, scoped, tag = 'scoped memory for tpu_custom_call.1']
    #allocation5 [shape = 'u8[401408]{0}', space=vmem, size = 0x62000, scoped, tag = 'input window, operand 1, single buffered']
    #allocation6 [shape = 's32[1]{0}', space=sflag, size = 0x4, scoped, tag = 'scoped memory for tpu_custom_call.1']
    #allocation7 [shape = 'u8[401408]{0}', space=vmem, size = 0x62000, scoped, tag = 'output window, operand 0, single buffered']
    %7 = vsyncpa [#allocation3], 0
    %8 = vsyncpa [#allocation6], 0
    %9 = vsyncpa [#allocation4], 0
    // Predicated region
    $region2: #{tpu_custom_call.1} parent=1 // pred_check
      _
    $region3: #{tpu_custom_call.1} parent=1 // pred_check_branch
      %11 = sbr.rel (0) target = $region5
    $region4: #{tpu_custom_call.1} parent=1 // pred_region
      %13 = vsyncadd [#allocation3], 0
      %s14 = sshll.u32 %s0, 4
      %s15 = int_to_ptr.hbm [resolvable:$true] %s14
      %s16 = sshll.u32 [#allocation2], 4
      %s17 = int_to_ptr.vmem [resolvable:$true] %s16
      %22 = dma.hbm_to_vmem [thread:$0]  %s15, 12544, %s17, [#allocation3], 128, 128, 8
    $region5: #{tpu_custom_call.1} parent=1 // pred_fallthru
      _
    // Predicated region
    $region6: #{tpu_custom_call.1} parent=1 // pred_check
      _
    $region7: #{tpu_custom_call.1} parent=1 // pred_check_branch
      %24 = sbr.rel (0) target = $region9
    $region8: #{tpu_custom_call.1} parent=1 // pred_region
      %26 = vsyncadd [#allocation6], 0
      %s27 = sshll.u32 %s1, 4
      %s28 = int_to_ptr.hbm [resolvable:$true] %s27
      %s29 = sshll.u32 [#allocation5], 4
      %s30 = int_to_ptr.vmem [resolvable:$true] %s29
      %35 = dma.hbm_to_vmem [thread:$0]  %s28, 12544, %s30, [#allocation6], 128, 128, 8
    $region9: #{tpu_custom_call.1} parent=1 // pred_fallthru
      _
    // Predicated region
    $region10: #{tpu_custom_call.1} parent=1 // pred_check
      _
    $region11: #{tpu_custom_call.1} parent=1 // pred_check_branch
      %37 = sbr.rel (0) target = $region13
    $region12: #{tpu_custom_call.1} parent=1 // pred_region
      %39 = dma.done [#allocation3], 12544
    $region13: #{tpu_custom_call.1} parent=1 // pred_fallthru
      _
    // Predicated region
    $region14: #{tpu_custom_call.1} parent=1 // pred_check
      _
    $region15: #{tpu_custom_call.1} parent=1 // pred_check_branch
      %41 = sbr.rel (0) target = $region17
    $region16: #{tpu_custom_call.1} parent=1 // pred_region
      %43 = dma.done [#allocation6], 12544
    $region17: #{tpu_custom_call.1} parent=1 // pred_fallthru
      _
    %v44 = vld [vmem:[#allocation2] sm:$0xff]
    %v45 = vld [vmem:[#allocation2 + $0x8] sm:$0xff]
    %v46 = vld [vmem:[#allocation2 + $0x10] sm:$0xff]
    %v47 = vld [vmem:[#allocation2 + $0x18] sm:$0xff]
    %v48 = vld [vmem:[#allocation2 + $0x20] sm:$0xff]
    %v49 = vld [vmem:[#allocation2 + $0x28] sm:$0xff]
    %v50 = vld [vmem:[#allocation2 + $0x30] sm:$0xff]
    %v51 = vld [vmem:[#allocation2 + $0x38] sm:$0xff]
    %v52 = vld [vmem:[#allocation2 + $0x40] sm:$0xff]
    %v53 = vld [vmem:[#allocation2 + $0x48] sm:$0xff]
    %v54 = vld [vmem:[#allocation2 + $0x50] sm:$0xff]
    %v55 = vld [vmem:[#allocation2 + $0x58] sm:$0xff]
    %v56 = vld [vmem:[#allocation2 + $0x60] sm:$0xff]
    %v57 = vld [vmem:[#allocation2 + $0x68] sm:$0xff]
    %v58 = vld [vmem:[#allocation2 + $0x70] sm:$0xff]
    %v59 = vld [vmem:[#allocation2 + $0x78] sm:$0xff]
    %v60 = vld [vmem:[#allocation2 + $0x80] sm:$0xff]
    %v61 = vld [vmem:[#allocation2 + $0x88] sm:$0xff]
    %v62 = vld [vmem:[#allocation2 + $0x90] sm:$0xff]
    %v63 = vld [vmem:[#allocation2 + $0x98] sm:$0xff]
    %v64 = vld [vmem:[#allocation2 + $0xa0] sm:$0xff]
    %v65 = vld [vmem:[#allocation2 + $0xa8] sm:$0xff]
    %v66 = vld [vmem:[#allocation2 + $0xb0] sm:$0xff]
    %v67 = vld [vmem:[#allocation2 + $0xb8] sm:$0xff]
    %v68 = vld [vmem:[#allocation2 + $0xc0] sm:$0xff]
    %v69 = vld [vmem:[#allocation2 + $0xc8] sm:$0xff]
    %v70 = vld [vmem:[#allocation2 + $0xd0] sm:$0xff]
    %v71 = vld [vmem:[#allocation2 + $0xd8] sm:$0xff]
    %v72 = vld [vmem:[#allocation2 + $0xe0] sm:$0xff]
    %v73 = vld [vmem:[#allocation2 + $0xe8] sm:$0xff]
    %v74 = vld [vmem:[#allocation2 + $0xf0] sm:$0xff]
    %v75 = vld [vmem:[#allocation2 + $0xf8] sm:$0xff]
    %v76 = vld [vmem:[#allocation2 + $0x100] sm:$0xff]
    %v77 = vld [vmem:[#allocation2 + $0x108] sm:$0xff]
    %v78 = vld [vmem:[#allocation2 + $0x110] sm:$0xff]
    %v79 = vld [vmem:[#allocation2 + $0x118] sm:$0xff]
    %v80 = vld [vmem:[#allocation2 + $0x120] sm:$0xff]
    %v81 = vld [vmem:[#allocation2 + $0x128] sm:$0xff]
    %v82 = vld [vmem:[#allocation2 + $0x130] sm:$0xff]
    %v83 = vld [vmem:[#allocation2 + $0x138] sm:$0xff]
    %v84 = vld [vmem:[#allocation2 + $0x140] sm:$0xff]
    %v85 = vld [vmem:[#allocation2 + $0x148] sm:$0xff]
    %v86 = vld [vmem:[#allocation2 + $0x150] sm:$0xff]
    %v87 = vld [vmem:[#allocation2 + $0x158] sm:$0xff]
    %v88 = vld [vmem:[#allocation2 + $0x160] sm:$0xff]
    %v89 = vld [vmem:[#allocation2 + $0x168] sm:$0xff]
    %v90 = vld [vmem:[#allocation2 + $0x170] sm:$0xff]
    %v91 = vld [vmem:[#allocation2 + $0x178] sm:$0xff]
    %v92 = vld [vmem:[#allocation2 + $0x180] sm:$0xff]
    %v93 = vld [vmem:[#allocation2 + $0x188] sm:$0xff]
    %v94 = vld [vmem:[#allocation2 + $0x190] sm:$0xff]
    %v95 = vld [vmem:[#allocation2 + $0x198] sm:$0xff]
    %v96 = vld [vmem:[#allocation2 + $0x1a0] sm:$0xff]
    %v97 = vld [vmem:[#allocation2 + $0x1a8] sm:$0xff]
    %v98 = vld [vmem:[#allocation2 + $0x1b0] sm:$0xff]
    %v99 = vld [vmem:[#allocation2 + $0x1b8] sm:$0xff]
    %v100 = vld [vmem:[#allocation2 + $0x1c0] sm:$0xff]
    %v101 = vld [vmem:[#allocation2 + $0x1c8] sm:$0xff]
    %v102 = vld [vmem:[#allocation2 + $0x1d0] sm:$0xff]
    %v103 = vld [vmem:[#allocation2 + $0x1d8] sm:$0xff]
    %v104 = vld [vmem:[#allocation2 + $0x1e0] sm:$0xff]
    %v105 = vld [vmem:[#allocation2 + $0x1e8] sm:$0xff]
    %v106 = vld [vmem:[#allocation2 + $0x1f0] sm:$0xff]
    %v107 = vld [vmem:[#allocation2 + $0x1f8] sm:$0xff]
    %v108 = vld [vmem:[#allocation2 + $0x200] sm:$0xff]
    %v109 = vld [vmem:[#allocation2 + $0x208] sm:$0xff]
    %v110 = vld [vmem:[#allocation2 + $0x210] sm:$0xff]
    %v111 = vld [vmem:[#allocation2 + $0x218] sm:$0xff]
    %v112 = vld [vmem:[#allocation2 + $0x220] sm:$0xff]
    %v113 = vld [vmem:[#allocation2 + $0x228] sm:$0xff]
    %v114 = vld [vmem:[#allocation2 + $0x230] sm:$0xff]
    %v115 = vld [vmem:[#allocation2 + $0x238] sm:$0xff]
    %v116 = vld [vmem:[#allocation2 + $0x240] sm:$0xff]
    %v117 = vld [vmem:[#allocation2 + $0x248] sm:$0xff]
    %v118 = vld [vmem:[#allocation2 + $0x250] sm:$0xff]
    %v119 = vld [vmem:[#allocation2 + $0x258] sm:$0xff]
    %v120 = vld [vmem:[#allocation2 + $0x260] sm:$0xff]
    %v121 = vld [vmem:[#allocation2 + $0x268] sm:$0xff]
    %v122 = vld [vmem:[#allocation2 + $0x270] sm:$0xff]
    %v123 = vld [vmem:[#allocation2 + $0x278] sm:$0xff]
    %v124 = vld [vmem:[#allocation2 + $0x280] sm:$0xff]
    %v125 = vld [vmem:[#allocation2 + $0x288] sm:$0xff]
    %v126 = vld [vmem:[#allocation2 + $0x290] sm:$0xff]
    %v127 = vld [vmem:[#allocation2 + $0x298] sm:$0xff]
    %v128 = vld [vmem:[#allocation2 + $0x2a0] sm:$0xff]
    %v129 = vld [vmem:[#allocation2 + $0x2a8] sm:$0xff]
    %v130 = vld [vmem:[#allocation2 + $0x2b0] sm:$0xff]
    %v131 = vld [vmem:[#allocation2 + $0x2b8] sm:$0xff]
    %v132 = vld [vmem:[#allocation2 + $0x2c0] sm:$0xff]
    %v133 = vld [vmem:[#allocation2 + $0x2c8] sm:$0xff]
    %v134 = vld [vmem:[#allocation2 + $0x2d0] sm:$0xff]
    %v135 = vld [vmem:[#allocation2 + $0x2d8] sm:$0xff]
    %v136 = vld [vmem:[#allocation2 + $0x2e0] sm:$0xff]
    %v137 = vld [vmem:[#allocation2 + $0x2e8] sm:$0xff]
    %v138 = vld [vmem:[#allocation2 + $0x2f0] sm:$0xff]
    %v139 = vld [vmem:[#allocation2 + $0x2f8] sm:$0xff]
    %v140 = vld [vmem:[#allocation2 + $0x300] sm:$0xff]
    %v141 = vld [vmem:[#allocation2 + $0x308] sm:$0xff]
    %v142 = vld [vmem:[#allocation5] sm:$0xff]
    %v143 = vld [vmem:[#allocation5 + $0x8] sm:$0xff]
    %v144 = vld [vmem:[#allocation5 + $0x10] sm:$0xff]
    %v145 = vld [vmem:[#allocation5 + $0x18] sm:$0xff]
    %v146 = vld [vmem:[#allocation5 + $0x20] sm:$0xff]
    %v147 = vld [vmem:[#allocation5 + $0x28] sm:$0xff]
    %v148 = vld [vmem:[#allocation5 + $0x30] sm:$0xff]
    %v149 = vld [vmem:[#allocation5 + $0x38] sm:$0xff]
    %v150 = vld [vmem:[#allocation5 + $0x40] sm:$0xff]
    %v151 = vld [vmem:[#allocation5 + $0x48] sm:$0xff]
    %v152 = vld [vmem:[#allocation5 + $0x50] sm:$0xff]
    %v153 = vld [vmem:[#allocation5 + $0x58] sm:$0xff]
    %v154 = vld [vmem:[#allocation5 + $0x60] sm:$0xff]
    %v155 = vld [vmem:[#allocation5 + $0x68] sm:$0xff]
    %v156 = vld [vmem:[#allocation5 + $0x70] sm:$0xff]
    %v157 = vld [vmem:[#allocation5 + $0x78] sm:$0xff]
    %v158 = vld [vmem:[#allocation5 + $0x80] sm:$0xff]
    %v159 = vld [vmem:[#allocation5 + $0x88] sm:$0xff]
    %v160 = vld [vmem:[#allocation5 + $0x90] sm:$0xff]
    %v161 = vld [vmem:[#allocation5 + $0x98] sm:$0xff]
    %v162 = vld [vmem:[#allocation5 + $0xa0] sm:$0xff]
    %v163 = vld [vmem:[#allocation5 + $0xa8] sm:$0xff]
    %v164 = vld [vmem:[#allocation5 + $0xb0] sm:$0xff]
    %v165 = vld [vmem:[#allocation5 + $0xb8] sm:$0xff]
    %v166 = vld [vmem:[#allocation5 + $0xc0] sm:$0xff]
    %v167 = vld [vmem:[#allocation5 + $0xc8] sm:$0xff]
    %v168 = vld [vmem:[#allocation5 + $0xd0] sm:$0xff]
    %v169 = vld [vmem:[#allocation5 + $0xd8] sm:$0xff]
    %v170 = vld [vmem:[#allocation5 + $0xe0] sm:$0xff]
    %v171 = vld [vmem:[#allocation5 + $0xe8] sm:$0xff]
    %v172 = vld [vmem:[#allocation5 + $0xf0] sm:$0xff]
    %v173 = vld [vmem:[#allocation5 + $0xf8] sm:$0xff]
    %v174 = vld [vmem:[#allocation5 + $0x100] sm:$0xff]
    %v175 = vld [vmem:[#allocation5 + $0x108] sm:$0xff]
    %v176 = vld [vmem:[#allocation5 + $0x110] sm:$0xff]
    %v177 = vld [vmem:[#allocation5 + $0x118] sm:$0xff]
    %v178 = vld [vmem:[#allocation5 + $0x120] sm:$0xff]
    %v179 = vld [vmem:[#allocation5 + $0x128] sm:$0xff]
    %v180 = vld [vmem:[#allocation5 + $0x130] sm:$0xff]
    %v181 = vld [vmem:[#allocation5 + $0x138] sm:$0xff]
    %v182 = vld [vmem:[#allocation5 + $0x140] sm:$0xff]
    %v183 = vld [vmem:[#allocation5 + $0x148] sm:$0xff]
    %v184 = vld [vmem:[#allocation5 + $0x150] sm:$0xff]
    %v185 = vld [vmem:[#allocation5 + $0x158] sm:$0xff]
    %v186 = vld [vmem:[#allocation5 + $0x160] sm:$0xff]
    %v187 = vld [vmem:[#allocation5 + $0x168] sm:$0xff]
    %v188 = vld [vmem:[#allocation5 + $0x170] sm:$0xff]
    %v189 = vld [vmem:[#allocation5 + $0x178] sm:$0xff]
    %v190 = vld [vmem:[#allocation5 + $0x180] sm:$0xff]
    %v191 = vld [vmem:[#allocation5 + $0x188] sm:$0xff]
    %v192 = vld [vmem:[#allocation5 + $0x190] sm:$0xff]
    %v193 = vld [vmem:[#allocation5 + $0x198] sm:$0xff]
    %v194 = vld [vmem:[#allocation5 + $0x1a0] sm:$0xff]
    %v195 = vld [vmem:[#allocation5 + $0x1a8] sm:$0xff]
    %v196 = vld [vmem:[#allocation5 + $0x1b0] sm:$0xff]
    %v197 = vld [vmem:[#allocation5 + $0x1b8] sm:$0xff]
    %v198 = vld [vmem:[#allocation5 + $0x1c0] sm:$0xff]
    %v199 = vld [vmem:[#allocation5 + $0x1c8] sm:$0xff]
    %v200 = vld [vmem:[#allocation5 + $0x1d0] sm:$0xff]
    %v201 = vld [vmem:[#allocation5 + $0x1d8] sm:$0xff]
    %v202 = vld [vmem:[#allocation5 + $0x1e0] sm:$0xff]
    %v203 = vld [vmem:[#allocation5 + $0x1e8] sm:$0xff]
    %v204 = vld [vmem:[#allocation5 + $0x1f0] sm:$0xff]
    %v205 = vld [vmem:[#allocation5 + $0x1f8] sm:$0xff]
    %v206 = vld [vmem:[#allocation5 + $0x200] sm:$0xff]
    %v207 = vld [vmem:[#allocation5 + $0x208] sm:$0xff]
    %v208 = vld [vmem:[#allocation5 + $0x210] sm:$0xff]
    %v209 = vld [vmem:[#allocation5 + $0x218] sm:$0xff]
    %v210 = vld [vmem:[#allocation5 + $0x220] sm:$0xff]
    %v211 = vld [vmem:[#allocation5 + $0x228] sm:$0xff]
    %v212 = vld [vmem:[#allocation5 + $0x230] sm:$0xff]
    %v213 = vld [vmem:[#allocation5 + $0x238] sm:$0xff]
    %v214 = vld [vmem:[#allocation5 + $0x240] sm:$0xff]
    %v215 = vld [vmem:[#allocation5 + $0x248] sm:$0xff]
    %v216 = vld [vmem:[#allocation5 + $0x250] sm:$0xff]
    %v217 = vld [vmem:[#allocation5 + $0x258] sm:$0xff]
    %v218 = vld [vmem:[#allocation5 + $0x260] sm:$0xff]
    %v219 = vld [vmem:[#allocation5 + $0x268] sm:$0xff]
    %v220 = vld [vmem:[#allocation5 + $0x270] sm:$0xff]
    %v221 = vld [vmem:[#allocation5 + $0x278] sm:$0xff]
    %v222 = vld [vmem:[#allocation5 + $0x280] sm:$0xff]
    %v223 = vld [vmem:[#allocation5 + $0x288] sm:$0xff]
    %v224 = vld [vmem:[#allocation5 + $0x290] sm:$0xff]
    %v225 = vld [vmem:[#allocation5 + $0x298] sm:$0xff]
    %v226 = vld [vmem:[#allocation5 + $0x2a0] sm:$0xff]
    %v227 = vld [vmem:[#allocation5 + $0x2a8] sm:$0xff]
    %v228 = vld [vmem:[#allocation5 + $0x2b0] sm:$0xff]
    %v229 = vld [vmem:[#allocation5 + $0x2b8] sm:$0xff]
    %v230 = vld [vmem:[#allocation5 + $0x2c0] sm:$0xff]
    %v231 = vld [vmem:[#allocation5 + $0x2c8] sm:$0xff]
    %v232 = vld [vmem:[#allocation5 + $0x2d0] sm:$0xff]
    %v233 = vld [vmem:[#allocation5 + $0x2d8] sm:$0xff]
    %v234 = vld [vmem:[#allocation5 + $0x2e0] sm:$0xff]
    %v235 = vld [vmem:[#allocation5 + $0x2e8] sm:$0xff]
    %v236 = vld [vmem:[#allocation5 + $0x2f0] sm:$0xff]
    %v237 = vld [vmem:[#allocation5 + $0x2f8] sm:$0xff]
    %v238 = vld [vmem:[#allocation5 + $0x300] sm:$0xff]
    %v239 = vld [vmem:[#allocation5 + $0x308] sm:$0xff]
    %v240 = vadd.f32 %v44, %v142
    %v241 = vadd.f32 %v45, %v143
    %v242 = vadd.f32 %v46, %v144
    %v243 = vadd.f32 %v47, %v145
    %v244 = vadd.f32 %v48, %v146
    %v245 = vadd.f32 %v49, %v147
    %v246 = vadd.f32 %v50, %v148
    %v247 = vadd.f32 %v51, %v149
    %v248 = vadd.f32 %v52, %v150
    %v249 = vadd.f32 %v53, %v151
    %v250 = vadd.f32 %v54, %v152
    %v251 = vadd.f32 %v55, %v153
    %v252 = vadd.f32 %v56, %v154
    %v253 = vadd.f32 %v57, %v155
    %v254 = vadd.f32 %v58, %v156
    %v255 = vadd.f32 %v59, %v157
    %v256 = vadd.f32 %v60, %v158
    %v257 = vadd.f32 %v61, %v159
    %v258 = vadd.f32 %v62, %v160
    %v259 = vadd.f32 %v63, %v161
    %v260 = vadd.f32 %v64, %v162
    %v261 = vadd.f32 %v65, %v163
    %v262 = vadd.f32 %v66, %v164
    %v263 = vadd.f32 %v67, %v165
    %v264 = vadd.f32 %v68, %v166
    %v265 = vadd.f32 %v69, %v167
    %v266 = vadd.f32 %v70, %v168
    %v267 = vadd.f32 %v71, %v169
    %v268 = vadd.f32 %v72, %v170
    %v269 = vadd.f32 %v73, %v171
    %v270 = vadd.f32 %v74, %v172
    %v271 = vadd.f32 %v75, %v173
    %v272 = vadd.f32 %v76, %v174
    %v273 = vadd.f32 %v77, %v175
    %v274 = vadd.f32 %v78, %v176
    %v275 = vadd.f32 %v79, %v177
    %v276 = vadd.f32 %v80, %v178
    %v277 = vadd.f32 %v81, %v179
    %v278 = vadd.f32 %v82, %v180
    %v279 = vadd.f32 %v83, %v181
    %v280 = vadd.f32 %v84, %v182
    %v281 = vadd.f32 %v85, %v183
    %v282 = vadd.f32 %v86, %v184
    %v283 = vadd.f32 %v87, %v185
    %v284 = vadd.f32 %v88, %v186
    %v285 = vadd.f32 %v89, %v187
    %v286 = vadd.f32 %v90, %v188
    %v287 = vadd.f32 %v91, %v189
    %v288 = vadd.f32 %v92, %v190
    %v289 = vadd.f32 %v93, %v191
    %v290 = vadd.f32 %v94, %v192
    %v291 = vadd.f32 %v95, %v193
    %v292 = vadd.f32 %v96, %v194
    %v293 = vadd.f32 %v97, %v195
    %v294 = vadd.f32 %v98, %v196
    %v295 = vadd.f32 %v99, %v197
    %v296 = vadd.f32 %v100, %v198
    %v297 = vadd.f32 %v101, %v199
    %v298 = vadd.f32 %v102, %v200
    %v299 = vadd.f32 %v103, %v201
    %v300 = vadd.f32 %v104, %v202
    %v301 = vadd.f32 %v105, %v203
    %v302 = vadd.f32 %v106, %v204
    %v303 = vadd.f32 %v107, %v205
    %v304 = vadd.f32 %v108, %v206
    %v305 = vadd.f32 %v109, %v207
    %v306 = vadd.f32 %v110, %v208
    %v307 = vadd.f32 %v111, %v209
    %v308 = vadd.f32 %v112, %v210
    %v309 = vadd.f32 %v113, %v211
    %v310 = vadd.f32 %v114, %v212
    %v311 = vadd.f32 %v115, %v213
    %v312 = vadd.f32 %v116, %v214
    %v313 = vadd.f32 %v117, %v215
    %v314 = vadd.f32 %v118, %v216
    %v315 = vadd.f32 %v119, %v217
    %v316 = vadd.f32 %v120, %v218
    %v317 = vadd.f32 %v121, %v219
    %v318 = vadd.f32 %v122, %v220
    %v319 = vadd.f32 %v123, %v221
    %v320 = vadd.f32 %v124, %v222
    %v321 = vadd.f32 %v125, %v223
    %v322 = vadd.f32 %v126, %v224
    %v323 = vadd.f32 %v127, %v225
    %v324 = vadd.f32 %v128, %v226
    %v325 = vadd.f32 %v129, %v227
    %v326 = vadd.f32 %v130, %v228
    %v327 = vadd.f32 %v131, %v229
    %v328 = vadd.f32 %v132, %v230
    %v329 = vadd.f32 %v133, %v231
    %v330 = vadd.f32 %v134, %v232
    %v331 = vadd.f32 %v135, %v233
    %v332 = vadd.f32 %v136, %v234
    %v333 = vadd.f32 %v137, %v235
    %v334 = vadd.f32 %v138, %v236
    %v335 = vadd.f32 %v139, %v237
    %v336 = vadd.f32 %v140, %v238
    %v337 = vadd.f32 %v141, %v239
    %338 = vst [vmem:[#allocation7] sm:$0xff] %v240
    %339 = vst [vmem:[#allocation7 + $0x8] sm:$0xff] %v241
    %340 = vst [vmem:[#allocation7 + $0x10] sm:$0xff] %v242
    %341 = vst [vmem:[#allocation7 + $0x18] sm:$0xff] %v243
    %342 = vst [vmem:[#allocation7 + $0x20] sm:$0xff] %v244
    %343 = vst [vmem:[#allocation7 + $0x28] sm:$0xff] %v245
    %344 = vst [vmem:[#allocation7 + $0x30] sm:$0xff] %v246
    %345 = vst [vmem:[#allocation7 + $0x38] sm:$0xff] %v247
    %346 = vst [vmem:[#allocation7 + $0x40] sm:$0xff] %v248
    %347 = vst [vmem:[#allocation7 + $0x48] sm:$0xff] %v249
    %348 = vst [vmem:[#allocation7 + $0x50] sm:$0xff] %v250
    %349 = vst [vmem:[#allocation7 + $0x58] sm:$0xff] %v251
    %350 = vst [vmem:[#allocation7 + $0x60] sm:$0xff] %v252
    %351 = vst [vmem:[#allocation7 + $0x68] sm:$0xff] %v253
    %352 = vst [vmem:[#allocation7 + $0x70] sm:$0xff] %v254
    %353 = vst [vmem:[#allocation7 + $0x78] sm:$0xff] %v255
    %354 = vst [vmem:[#allocation7 + $0x80] sm:$0xff] %v256
    %355 = vst [vmem:[#allocation7 + $0x88] sm:$0xff] %v257
    %356 = vst [vmem:[#allocation7 + $0x90] sm:$0xff] %v258
    %357 = vst [vmem:[#allocation7 + $0x98] sm:$0xff] %v259
    %358 = vst [vmem:[#allocation7 + $0xa0] sm:$0xff] %v260
    %359 = vst [vmem:[#allocation7 + $0xa8] sm:$0xff] %v261
    %360 = vst [vmem:[#allocation7 + $0xb0] sm:$0xff] %v262
    %361 = vst [vmem:[#allocation7 + $0xb8] sm:$0xff] %v263
    %362 = vst [vmem:[#allocation7 + $0xc0] sm:$0xff] %v264
    %363 = vst [vmem:[#allocation7 + $0xc8] sm:$0xff] %v265
    %364 = vst [vmem:[#allocation7 + $0xd0] sm:$0xff] %v266
    %365 = vst [vmem:[#allocation7 + $0xd8] sm:$0xff] %v267
    %366 = vst [vmem:[#allocation7 + $0xe0] sm:$0xff] %v268
    %367 = vst [vmem:[#allocation7 + $0xe8] sm:$0xff] %v269
    %368 = vst [vmem:[#allocation7 + $0xf0] sm:$0xff] %v270
    %369 = vst [vmem:[#allocation7 + $0xf8] sm:$0xff] %v271
    %370 = vst [vmem:[#allocation7 + $0x100] sm:$0xff] %v272
    %371 = vst [vmem:[#allocation7 + $0x108] sm:$0xff] %v273
    %372 = vst [vmem:[#allocation7 + $0x110] sm:$0xff] %v274
    %373 = vst [vmem:[#allocation7 + $0x118] sm:$0xff] %v275
    %374 = vst [vmem:[#allocation7 + $0x120] sm:$0xff] %v276
    %375 = vst [vmem:[#allocation7 + $0x128] sm:$0xff] %v277
    %376 = vst [vmem:[#allocation7 + $0x130] sm:$0xff] %v278
    %377 = vst [vmem:[#allocation7 + $0x138] sm:$0xff] %v279
    %378 = vst [vmem:[#allocation7 + $0x140] sm:$0xff] %v280
    %379 = vst [vmem:[#allocation7 + $0x148] sm:$0xff] %v281
    %380 = vst [vmem:[#allocation7 + $0x150] sm:$0xff] %v282
    %381 = vst [vmem:[#allocation7 + $0x158] sm:$0xff] %v283
    %382 = vst [vmem:[#allocation7 + $0x160] sm:$0xff] %v284
    %383 = vst [vmem:[#allocation7 + $0x168] sm:$0xff] %v285
    %384 = vst [vmem:[#allocation7 + $0x170] sm:$0xff] %v286
    %385 = vst [vmem:[#allocation7 + $0x178] sm:$0xff] %v287
    %386 = vst [vmem:[#allocation7 + $0x180] sm:$0xff] %v288
    %387 = vst [vmem:[#allocation7 + $0x188] sm:$0xff] %v289
    %388 = vst [vmem:[#allocation7 + $0x190] sm:$0xff] %v290
    %389 = vst [vmem:[#allocation7 + $0x198] sm:$0xff] %v291
    %390 = vst [vmem:[#allocation7 + $0x1a0] sm:$0xff] %v292
    %391 = vst [vmem:[#allocation7 + $0x1a8] sm:$0xff] %v293
    %392 = vst [vmem:[#allocation7 + $0x1b0] sm:$0xff] %v294
    %393 = vst [vmem:[#allocation7 + $0x1b8] sm:$0xff] %v295
    %394 = vst [vmem:[#allocation7 + $0x1c0] sm:$0xff] %v296
    %395 = vst [vmem:[#allocation7 + $0x1c8] sm:$0xff] %v297
    %396 = vst [vmem:[#allocation7 + $0x1d0] sm:$0xff] %v298
    %397 = vst [vmem:[#allocation7 + $0x1d8] sm:$0xff] %v299
    %398 = vst [vmem:[#allocation7 + $0x1e0] sm:$0xff] %v300
    %399 = vst [vmem:[#allocation7 + $0x1e8] sm:$0xff] %v301
    %400 = vst [vmem:[#allocation7 + $0x1f0] sm:$0xff] %v302
    %401 = vst [vmem:[#allocation7 + $0x1f8] sm:$0xff] %v303
    %402 = vst [vmem:[#allocation7 + $0x200] sm:$0xff] %v304
    %403 = vst [vmem:[#allocation7 + $0x208] sm:$0xff] %v305
    %404 = vst [vmem:[#allocation7 + $0x210] sm:$0xff] %v306
    %405 = vst [vmem:[#allocation7 + $0x218] sm:$0xff] %v307
    %406 = vst [vmem:[#allocation7 + $0x220] sm:$0xff] %v308
    %407 = vst [vmem:[#allocation7 + $0x228] sm:$0xff] %v309
    %408 = vst [vmem:[#allocation7 + $0x230] sm:$0xff] %v310
    %409 = vst [vmem:[#allocation7 + $0x238] sm:$0xff] %v311
    %410 = vst [vmem:[#allocation7 + $0x240] sm:$0xff] %v312
    %411 = vst [vmem:[#allocation7 + $0x248] sm:$0xff] %v313
    %412 = vst [vmem:[#allocation7 + $0x250] sm:$0xff] %v314
    %413 = vst [vmem:[#allocation7 + $0x258] sm:$0xff] %v315
    %414 = vst [vmem:[#allocation7 + $0x260] sm:$0xff] %v316
    %415 = vst [vmem:[#allocation7 + $0x268] sm:$0xff] %v317
    %416 = vst [vmem:[#allocation7 + $0x270] sm:$0xff] %v318
    %417 = vst [vmem:[#allocation7 + $0x278] sm:$0xff] %v319
    %418 = vst [vmem:[#allocation7 + $0x280] sm:$0xff] %v320
    %419 = vst [vmem:[#allocation7 + $0x288] sm:$0xff] %v321
    %420 = vst [vmem:[#allocation7 + $0x290] sm:$0xff] %v322
    %421 = vst [vmem:[#allocation7 + $0x298] sm:$0xff] %v323
    %422 = vst [vmem:[#allocation7 + $0x2a0] sm:$0xff] %v324
    %423 = vst [vmem:[#allocation7 + $0x2a8] sm:$0xff] %v325
    %424 = vst [vmem:[#allocation7 + $0x2b0] sm:$0xff] %v326
    %425 = vst [vmem:[#allocation7 + $0x2b8] sm:$0xff] %v327
    %426 = vst [vmem:[#allocation7 + $0x2c0] sm:$0xff] %v328
    %427 = vst [vmem:[#allocation7 + $0x2c8] sm:$0xff] %v329
    %428 = vst [vmem:[#allocation7 + $0x2d0] sm:$0xff] %v330
    %429 = vst [vmem:[#allocation7 + $0x2d8] sm:$0xff] %v331
    %430 = vst [vmem:[#allocation7 + $0x2e0] sm:$0xff] %v332
    %431 = vst [vmem:[#allocation7 + $0x2e8] sm:$0xff] %v333
    %432 = vst [vmem:[#allocation7 + $0x2f0] sm:$0xff] %v334
    %433 = vst [vmem:[#allocation7 + $0x2f8] sm:$0xff] %v335
    %434 = vst [vmem:[#allocation7 + $0x300] sm:$0xff] %v336
    %435 = vst [vmem:[#allocation7 + $0x308] sm:$0xff] %v337
    // Predicated region
    $region18: #{tpu_custom_call.1} parent=1 // pred_check
      _
    $region19: #{tpu_custom_call.1} parent=1 // pred_check_branch
      %437 = sbr.rel (0) target = $region21
    $region20: #{tpu_custom_call.1} parent=1 // pred_region
      %439 = vsyncadd [#allocation4], 0
      %s440 = sshll.u32 [#allocation7], 4
      %s441 = int_to_ptr.vmem [resolvable:$true] %s440
      %s442 = sshll.u32 %s2, 4
      %s443 = int_to_ptr.hbm [resolvable:$true] %s442
      %448 = dma.vmem_to_hbm [thread:$0]  %s441, 12544, %s443, [#allocation4], 128, 128, 8
    $region21: #{tpu_custom_call.1} parent=1 // pred_fallthru
      _
    // Predicated region
    $region22: #{tpu_custom_call.1} parent=1 // pred_check
      _
    $region23: #{tpu_custom_call.1} parent=1 // pred_check_branch
      %450 = sbr.rel (0) target = $region25
    $region24: #{tpu_custom_call.1} parent=1 // pred_region
      %452 = dma.done [#allocation4], 12544
    $region25: #{tpu_custom_call.1} parent=1 // pred_fallthru
      _
    %453 = vsyncpa [#allocation3], 1
    %454 = vsyncpa [#allocation6], 1
    %455 = vsyncpa [#allocation4], 1

</llo_original>
